<compile_context>
chip_gen: v7x
topology: tpu7x:2x2x1
jax: 0.10.0
libtpu: 0.0.40
codegen_flags: <defaults>
</compile_context>

<pallas_src>
import functools

import jax
import jax.numpy as jnp
from jax.experimental import pallas as pl
from jax.experimental.pallas import tpu as pltpu

VMEM_LIMIT_BYTES = 48 * 1024 * 1024          # safe on v5e/v6e, <= ~48 MiB for v7x
P_RESIDENT_MAX_BYTES = 8 * 1024 * 1024       # keep P resident in VMEM up to 8 MiB


# ----------------------------------------------------------------------------
# Kernels
# ----------------------------------------------------------------------------
def _proj_kernel(x_ref, w_ref, b_ref, p_ref, r_ref):
    """Per row tile: xw = X @ [W_l | W_r]; P = X@W_l (bf16), R = X@W_r + b (f32)."""
    x = x_ref[...].astype(jnp.float32)
    xw = jnp.dot(x, w_ref[...], preferred_element_type=jnp.float32)
    hp = p_ref.shape[-1]
    p_ref[...] = xw[:, :hp].astype(p_ref.dtype)          # neighbor projection (bf16)
    r_ref[...] = xw[:, hp:] + b_ref[...]                 # root term + bias (hoisted, f32)


def _agg_kernel(a_ref, p_ref, inv_ref, r_ref, o_ref, acc_ref, *,
                tk, apply_relu, p_resident):
    """acc[i-tile] = sum_k A_cnt[i-tile, k-tile] @ P[k-tile];
       out = acc * inv_deg + R (+ relu) on the last K step."""
    k = pl.program_id(1)

    @pl.when(k == 0)
    def _():
        acc_ref[...] = jnp.zeros_like(acc_ref)

    if p_resident:
        start = pl.multiple_of(k * tk, 128)              # slice the resident P block
        p = p_ref[pl.ds(start, tk), :]
    else:
        p = p_ref[...]

    a = a_ref[...].astype(jnp.bfloat16)                  # int8 counts -> bf16 (exact)
    acc_ref[...] += jnp.dot(a, p, preferred_element_type=jnp.float32)

    @pl.when(k == pl.num_programs(1) - 1)
    def _():
        out = acc_ref[...] * inv_ref[...] + r_ref[...]   # exact f32 1/deg scale
        if apply_relu:
            out = jnp.maximum(out, 0.0)
        o_ref[...] = out.astype(o_ref.dtype)


# ----------------------------------------------------------------------------
# One SAGEConv layer = projection pass + tiled aggregation pass
# ----------------------------------------------------------------------------
def _sage_layer(a_i8, inv_deg, x, w_l, w_r, b, *, apply_relu, out_dtype,
                tm, tk, tm_proj):
    np_, f_in = x.shape
    hp = w_l.shape[1]                                    # lane-padded hidden width
    w_cat = jnp.concatenate([w_l, w_r], axis=1)          # (f_in, 2*hp): one MXU push

    # ---- pass 1: projection (row-tiled, large tiles: pure overhead otherwise) ----
    p, r = pl.pallas_call(
        _proj_kernel,
        out_shape=(jax.ShapeDtypeStruct((np_, hp), jnp.bfloat16),
                   jax.ShapeDtypeStruct((np_, hp), jnp.float32)),
        grid=(np_ // tm_proj,),
        in_specs=[
            pl.BlockSpec((tm_proj, f_in), lambda i: (i, 0)),
            pl.BlockSpec((f_in, 2 * hp), lambda i: (0, 0)),
            pl.BlockSpec((1, hp), lambda i: (0, 0)),
        ],
        out_specs=(pl.BlockSpec((tm_proj, hp), lambda i: (i, 0)),
                   pl.BlockSpec((tm_proj, hp), lambda i: (i, 0))),
        compiler_params=pltpu.CompilerParams(
            dimension_semantics=("parallel",),
            vmem_limit_bytes=VMEM_LIMIT_BYTES),
    )(x, w_cat, b)

    # ---- pass 2: aggregation (row tiles x K tiles, f32 accumulator) ----
    p_resident = (np_ * hp * 2) <= P_RESIDENT_MAX_BYTES
    if p_resident:
        # Single resident block: constant index_map -> DMA'd once, no re-stream.
        p_spec = pl.BlockSpec((np_, hp), lambda i, k: (0, 0))
    else:
        p_spec = pl.BlockSpec((tk, hp), lambda i, k: (k, 0))

    out = pl.pallas_call(
        functools.partial(_agg_kernel, tk=tk, apply_relu=apply_relu,
                          p_resident=p_resident),
        out_shape=jax.ShapeDtypeStruct((np_, hp), out_dtype),
        grid=(np_ // tm, np_ // tk),
        in_specs=[
            pl.BlockSpec((tm, tk), lambda i, k: (i, k)),     # A counts (int8)
            p_spec,                                          # P (bf16)
            pl.BlockSpec((tm, 1), lambda i, k: (i, 0)),      # 1/deg (f32)
            pl.BlockSpec((tm, hp), lambda i, k: (i, 0)),     # R (f32)
        ],
        out_specs=pl.BlockSpec((tm, hp), lambda i, k: (i, 0)),
        scratch_shapes=[pltpu.VMEM((tm, hp), jnp.float32)],
        compiler_params=pltpu.CompilerParams(
            dimension_semantics=("parallel", "arbitrary"),
            vmem_limit_bytes=VMEM_LIMIT_BYTES),
    )(a_i8, p, inv_deg, r)
    return out


# ----------------------------------------------------------------------------
# Host-side glue
# ----------------------------------------------------------------------------
def build_adj(edge_index, num_nodes):
    """C[i, j] = #edges j -> i (int8 counts) and per-row 1/in_deg (f32, exact).

    PyG mean aggregation averages over incoming messages, so duplicate edges
    contribute multiple times: mean_i = (C @ x) * (1 / sum_j C[i, j]).
    Counts must stay < 128 (int8); fine for the graphs used here.
    """
    src = edge_index[0]
    dst = edge_index[1]
    c = jnp.zeros((num_nodes, num_nodes), jnp.float32)
    c = c.at[dst, src].add(1.0)
    deg = c.sum(axis=1, keepdims=True)
    inv_deg = 1.0 / jnp.maximum(deg, 1.0)
    return c.astype(jnp.int8), inv_deg


def _pad2(m, rows, cols):
    r, c = m.shape
    return jnp.pad(m, ((0, rows - r), (0, cols - c)))


def _pick_tile(total, target, quantum=128):
    """Largest multiple of `quantum` that divides `total` and is <= target."""
    best = quantum
    cap = min(target, total)
    t = quantum
    while t <= cap:
        if total % t == 0:
            best = t
        t += quantum
    return best


def graph_sage_forward(x, edge_index, params, *,
                       tm_target=512, tk_target=2048, tm_proj_target=1024, hp=128):
    n, f_in = x.shape
    w1l, w1r, b1, w2l, w2r, b2 = params
    f_out = w2l.shape[1]

    np_ = ((n + 127) // 128) * 128                       # pad nodes to lane multiple
    # Keep >=2 row tiles when the graph allows it (megacore sharding on v7x),
    # and only pick tile sizes that divide the padded node count.
    tm = _pick_tile(np_, min(tm_target, max(128, np_ // 2)))
    tk = _pick_tile(np_, tk_target)
    tm_proj = _pick_tile(np_, tm_proj_target)

    # int8 in-edge count matrix + exact f32 per-row inverse degree, zero/one padded
    a_i8, inv_deg = build_adj(edge_index, n)
    a_i8 = _pad2(a_i8, np_, np_)
    inv_deg = jnp.pad(inv_deg, ((0, np_ - n), (0, 0)), constant_values=1.0)

    x_p = jnp.pad(x, ((0, np_ - n), (0, 0)))

    # lane-pad weights / biases to hp with zeros (padded lanes stay exactly zero,
    # padded H *rows* are relu(b1) but only feed padded output rows, sliced off below)
    w1l_p = _pad2(w1l, f_in, hp)
    w1r_p = _pad2(w1r, f_in, hp)
    b1_p = _pad2(b1, 1, hp)
    w2l_p = _pad2(w2l, hp, hp)
    w2r_p = _pad2(w2r, hp, hp)
    b2_p = _pad2(b2, 1, hp)

    h = _sage_layer(a_i8, inv_deg, x_p, w1l_p, w1r_p, b1_p,
                    apply_relu=True, out_dtype=jnp.bfloat16,
                    tm=tm, tk=tk, tm_proj=tm_proj)
    out = _sage_layer(a_i8, inv_deg, h, w2l_p, w2r_p, b2_p,
                      apply_relu=False, out_dtype=jnp.float32,
                      tm=tm, tk=tk, tm_proj=tm_proj)
    return out[:n, :f_out]


def init_params(key, f_in, hidden, f_out):
    """Deterministic Glorot-uniform-ish init for the two SAGEConv layers."""
    ks = jax.random.split(key, 6)

    def glorot(k, fan_in, fan_out):
        lim = (6.0 / (fan_in + fan_out)) ** 0.5
        return jax.random.uniform(k, (fan_in, fan_out), jnp.float32, -lim, lim)

    w1l = glorot(ks[0], f_in, hidden)    # lin_l of conv1 (neighbors)
    w1r = glorot(ks[1], f_in, hidden)    # lin_r of conv1 (root), no bias
    b1 = 0.1 * jax.random.normal(ks[2], (1, hidden), jnp.float32)
    w2l = glorot(ks[3], hidden, f_out)
    w2r = glorot(ks[4], hidden, f_out)
    b2 = 0.1 * jax.random.normal(ks[5], (1, f_out), jnp.float32)
    return (w1l, w1r, b1, w2l, w2r, b2)


def reference_forward(x, edge_index, params):
    """Pure-JAX f32 reference for sanity checking."""
    src, dst = edge_index[0], edge_index[1]
    c = jnp.zeros((x.shape[0], x.shape[0]), jnp.float32)
    c = c.at[dst, src].add(1.0)
    a = c / jnp.maximum(c.sum(axis=1, keepdims=True), 1.0)
    w1l, w1r, b1, w2l, w2r, b2 = params
    h = jnp.maximum(a @ x @ w1l + x @ w1r + b1, 0.0)
    return a @ h @ w2l + h @ w2r + b2


# ----------------------------------------------------------------------------
# Main
# ----------------------------------------------------------------------------
if __name__ == "__main__":
    key = jax.random.PRNGKey(0)
    k_x, k_p, k_e1, k_e2, k_x2 = jax.random.split(key, 5)

    F_IN, HIDDEN, F_OUT = 16, 32, 32
    params = init_params(k_p, F_IN, HIDDEN, F_OUT)

    # --- toy graph (N=8): ring + a few extra edges ---
    N = 8
    x = jax.random.normal(k_x, (N, F_IN), jnp.float32)
    src = jnp.array([0, 1, 2, 3, 4, 5, 6, 7, 0, 2, 4, 6], dtype=jnp.int32)
    dst = jnp.array([1, 2, 3, 4, 5, 6, 7, 0, 4, 6, 0, 2], dtype=jnp.int32)
    edge_index = jnp.stack([src, dst], axis=0)

    out = jax.block_until_ready(graph_sage_forward(x, edge_index, params))
    ref = reference_forward(x, edge_index, params)
    assert out.shape == (N, F_OUT)
    assert jnp.allclose(out, ref, atol=5e-2, rtol=5e-2), (
        float(jnp.max(jnp.abs(out - ref))))

    # --- midsize random graph (N=300) to exercise the (row, K) tiled grid ---
    N2, E2 = 300, 1200
    x2 = jax.random.normal(k_x2, (N2, F_IN), jnp.float32)
    src2 = jax.random.randint(k_e1, (E2,), 0, N2, jnp.int32)
    dst2 = jax.random.randint(k_e2, (E2,), 0, N2, jnp.int32)
    edge_index2 = jnp.stack([src2, dst2], axis=0)

    out2 = jax.block_until_ready(graph_sage_forward(x2, edge_index2, params))
    ref2 = reference_forward(x2, edge_index2, params)
    assert out2.shape == (N2, F_OUT)
    assert jnp.allclose(out2, ref2, atol=5e-2, rtol=5e-2), (
        float(jnp.max(jnp.abs(out2 - ref2))))

    print("KERNEL_OK")
</pallas_src>

<mosaic_0001>
module attributes {stable_mosaic.version = 11 : i64} {
  func.func @_proj_kernel(%arg0: i32, %arg1: memref<128x16xf32, #tpu.memory_space<vmem>>, %arg2: memref<16x256xf32, #tpu.memory_space<vmem>>, %arg3: memref<1x128xf32, #tpu.memory_space<vmem>>, %arg4: memref<128x128xbf16, #tpu.memory_space<vmem>>, %arg5: memref<128x128xf32, #tpu.memory_space<vmem>>) attributes {dimension_semantics = [#tpu.dimension_semantics<parallel>], iteration_bounds = array<i64: 1>, scalar_prefetch = 0 : i64, scratch_operands = 0 : i64, tpu.core_type = #tpu.core_type<tc>, window_params = [{transform_indices = @transform_0, window_bounds = array<i64: 128, 16>}, {pipeline_mode = #tpu.pipeline_mode<synchronous>, transform_indices = @transform_1, window_bounds = array<i64: 16, 256>}, {pipeline_mode = #tpu.pipeline_mode<synchronous>, transform_indices = @transform_2, window_bounds = array<i64: 1, 128>}, {transform_indices = @transform_3, window_bounds = array<i64: 128, 128>}, {transform_indices = @transform_4, window_bounds = array<i64: 128, 128>}]} {
    %c0 = arith.constant 0 : index
    %c0_0 = arith.constant 0 : index
    %0 = vector.load %arg1[%c0, %c0_0] : memref<128x16xf32, #tpu.memory_space<vmem>>, vector<128x16xf32>
    %c0_1 = arith.constant 0 : index
    %c0_2 = arith.constant 0 : index
    %1 = vector.load %arg2[%c0_1, %c0_2] : memref<16x256xf32, #tpu.memory_space<vmem>>, vector<16x256xf32>
    %cst = arith.constant dense<0.000000e+00> : vector<128x256xf32>
    %2 = tpu.matmul %0, %1, %cst {dimension_numbers = #tpu.dot_dimension_numbers<[1], [0], [0], [1], [0, 0, 1, 1], [], []>} : vector<128x16xf32>, vector<16x256xf32>, vector<128x256xf32> -> vector<128x256xf32>
    %3 = vector.extract_strided_slice %2 {offsets = [0, 0], sizes = [128, 128], strides = [1, 1]} : vector<128x256xf32> to vector<128x128xf32>
    %4 = arith.truncf %3 : vector<128x128xf32> to vector<128x128xbf16>
    %c0_3 = arith.constant 0 : index
    %c0_4 = arith.constant 0 : index
    %5 = vector.load %arg4[%c0_3, %c0_4] : memref<128x128xbf16, #tpu.memory_space<vmem>>, vector<128x128xbf16>
    tpu.vector_store %arg4[%c0_3, %c0_4], %4 {strides = array<i32>} : memref<128x128xbf16, #tpu.memory_space<vmem>>, vector<128x128xbf16>,
    %6 = vector.extract_strided_slice %2 {offsets = [0, 128], sizes = [128, 128], strides = [1, 1]} : vector<128x256xf32> to vector<128x128xf32>
    %c0_5 = arith.constant 0 : index
    %c0_6 = arith.constant 0 : index
    %7 = vector.load %arg3[%c0_5, %c0_6] : memref<1x128xf32, #tpu.memory_space<vmem>>, vector<1x128xf32>
    %8 = vector.broadcast %7 : vector<1x128xf32> to vector<128x128xf32>
    %9 = arith.addf %6, %8 : vector<128x128xf32>
    %c0_7 = arith.constant 0 : index
    %c0_8 = arith.constant 0 : index
    %10 = vector.load %arg5[%c0_7, %c0_8] : memref<128x128xf32, #tpu.memory_space<vmem>>, vector<128x128xf32>
    tpu.vector_store %arg5[%c0_7, %c0_8], %9 {strides = array<i32>} : memref<128x128xf32, #tpu.memory_space<vmem>>, vector<128x128xf32>,
    return
  }
  func.func @transform_0(%arg0: i32) -> (i32, i32) {
    %c0_i32 = arith.constant 0 : i32
    %c0_i32_0 = arith.constant 0 : i32
    return %arg0, %c0_i32 : i32, i32
  }
  func.func @transform_1(%arg0: i32) -> (i32, i32) {
    %c0_i32 = arith.constant 0 : i32
    %c0_i32_0 = arith.constant 0 : i32
    %c0_i32_1 = arith.constant 0 : i32
    return %c0_i32, %c0_i32_0 : i32, i32
  }
  func.func @transform_2(%arg0: i32) -> (i32, i32) {
    %c0_i32 = arith.constant 0 : i32
    %c0_i32_0 = arith.constant 0 : i32
    %c0_i32_1 = arith.constant 0 : i32
    return %c0_i32, %c0_i32_0 : i32, i32
  }
  func.func @transform_3(%arg0: i32) -> (i32, i32) {
    %c0_i32 = arith.constant 0 : i32
    %c0_i32_0 = arith.constant 0 : i32
    return %arg0, %c0_i32 : i32, i32
  }
  func.func @transform_4(%arg0: i32) -> (i32, i32) {
    %c0_i32 = arith.constant 0 : i32
    %c0_i32_0 = arith.constant 0 : i32
    return %arg0, %c0_i32 : i32, i32
  }
}

</mosaic_0001>

<llo_original>
// kernel: tpu_custom_call.1
$region0: #{tpu_custom_call.1}
  #allocation0 [shape = 'u32[]', space=smem, size = 0x4, offset = 0x4, fixed_abs, tag = 'smem constant byte address 0x4 - core index']
  #allocation1 [shape = 'u32[144,128]{1,0:T(1,128)}', space=vmem, size = 0x12000, scoped, tag = 'internal scratch']
  %s0 = inlined_call_operand.vmem [shape: f32[128,16], index: 0, kind: input, shape index: {}]
  %s1 = inlined_call_operand.vmem [shape: f32[16,256], index: 1, kind: input, shape index: {}]
  %s2 = inlined_call_operand.vmem [shape: f32[1,128], index: 2, kind: input, shape index: {}]
  %s3 = inlined_call_operand.hbm [shape: bf16[128,128], index: 3, kind: output, shape index: {0}]
  %s4 = inlined_call_operand.hbm [shape: f32[128,128], index: 4, kind: output, shape index: {1}]
  %5 = xla_tuple %s3, %s4
  %s6 = sld [smem:[#allocation0]]
  $region30: #{tpu_custom_call.1} parent=0
    _
  %s8 = ssub.s32 1, %s6
  %s9 = scalar_select 0, %s8, %s6
  $region1: #{tpu_custom_call.1} parent=0
    #allocation2 [shape = 'u8[32768]{0}', space=vmem, size = 0x8000, scoped, tag = 'output window, operand 0, single buffered']
    #allocation3 [shape = 's32[1]{0}', space=sflag, size = 0x4, scoped, tag = 'scoped memory for tpu_custom_call.1']
    #allocation4 [shape = 'u8[65536]{0}', space=vmem, size = 0x10000, scoped, tag = 'output window, operand 1, single buffered']
    #allocation5 [shape = 's32[1]{0}', space=sflag, size = 0x4, scoped, tag = 'scoped memory for tpu_custom_call.1']
    %10 = vsyncpa [#allocation3], 0
    %11 = vsyncpa [#allocation5], 0
    // Predicated region
    $region2: #{tpu_custom_call.1} parent=1 // pred_check
      _
    $region3: #{tpu_custom_call.1} parent=1 // pred_check_branch
      %13 = sbr.rel (0) target = $region5
    $region4: #{tpu_custom_call.1} parent=1 // pred_region
      _
    $region5: #{tpu_custom_call.1} parent=1 // pred_fallthru
      _
    // Predicated region
    $region6: #{tpu_custom_call.1} parent=1 // pred_check
      _
    $region7: #{tpu_custom_call.1} parent=1 // pred_check_branch
      %15 = sbr.rel (0) target = $region9
    $region8: #{tpu_custom_call.1} parent=1 // pred_region
      _
    $region9: #{tpu_custom_call.1} parent=1 // pred_fallthru
      _
    // Predicated region
    $region10: #{tpu_custom_call.1} parent=1 // pred_check
      _
    $region11: #{tpu_custom_call.1} parent=1 // pred_check_branch
      %17 = sbr.rel (0) target = $region13
    $region12: #{tpu_custom_call.1} parent=1 // pred_region
      _
    $region13: #{tpu_custom_call.1} parent=1 // pred_fallthru
      _
    %v18 = vld [vmem:[%s0] sm:$0xff]
    %v19 = vld [vmem:[%s0 + $0x8] sm:$0xff]
    %v20 = vld [vmem:[%s0 + $0x10] sm:$0xff]
    %v21 = vld [vmem:[%s0 + $0x18] sm:$0xff]
    %v22 = vld [vmem:[%s0 + $0x20] sm:$0xff]
    %v23 = vld [vmem:[%s0 + $0x28] sm:$0xff]
    %v24 = vld [vmem:[%s0 + $0x30] sm:$0xff]
    %v25 = vld [vmem:[%s0 + $0x38] sm:$0xff]
    %v26 = vld [vmem:[%s0 + $0x40] sm:$0xff]
    %v27 = vld [vmem:[%s0 + $0x48] sm:$0xff]
    %v28 = vld [vmem:[%s0 + $0x50] sm:$0xff]
    %v29 = vld [vmem:[%s0 + $0x58] sm:$0xff]
    %v30 = vld [vmem:[%s0 + $0x60] sm:$0xff]
    %v31 = vld [vmem:[%s0 + $0x68] sm:$0xff]
    %v32 = vld [vmem:[%s0 + $0x70] sm:$0xff]
    %v33 = vld [vmem:[%s0 + $0x78] sm:$0xff]
    %v34 = vld [vmem:[%s1] sm:$0xff]
    %v35 = vld [vmem:[%s1 + $0x8] sm:$0xff]
    %v36 = vld [vmem:[%s1 + $0x10] sm:$0xff]
    %v37 = vld [vmem:[%s1 + $0x18] sm:$0xff]
    %vm38 = vcmask 130048
    %v40 = vsel %vm38, %v18, 0
    %v43 = vsel %vm38, %v19, 0
    %v46 = vsel %vm38, %v20, 0
    %v49 = vsel %vm38, %v21, 0
    %v52 = vsel %vm38, %v22, 0
    %v55 = vsel %vm38, %v23, 0
    %v58 = vsel %vm38, %v24, 0
    %v61 = vsel %vm38, %v25, 0
    %v64 = vsel %vm38, %v26, 0
    %v67 = vsel %vm38, %v27, 0
    %v70 = vsel %vm38, %v28, 0
    %v73 = vsel %vm38, %v29, 0
    %v76 = vsel %vm38, %v30, 0
    %v79 = vsel %vm38, %v31, 0
    %v82 = vsel %vm38, %v32, 0
    %v85 = vsel %vm38, %v33, 0
    %87 = vmatprep.subr.mxu0 %v35
    %88 = vmatpush1.msra.mxu0 %v34
    %89 = vmatprep.subr.mxu0 %v37
    %90 = vmatpush1.msra.mxu0 %v36
    %91 = vmatprep.subr.mxu0 0.0
    %92 = vmatpush1.msra.mxu0 0.0
    %93 = vmatprep.subr.mxu0 0.0
    %94 = vmatpush1.msra.mxu0 0.0
    %95 = vmatprep.subr.mxu0 0.0
    %96 = vmatpush1.msra.mxu0 0.0
    %97 = vmatprep.subr.mxu0 0.0
    %98 = vmatpush1.msra.mxu0 0.0
    %99 = vmatprep.subr.mxu0 0.0
    %100 = vmatpush1.msra.mxu0 0.0
    %101 = vmatprep.subr.mxu0 0.0
    %102 = vmatpush1.msra.mxu0 0.0
    %103 = vmatprep.subr.mxu0 0.0
    %104 = vmatpush1.msra.mxu0 0.0
    %105 = vmatprep.subr.mxu0 0.0
    %106 = vmatpush1.msra.mxu0 0.0
    %107 = vmatprep.subr.mxu0 0.0
    %108 = vmatpush1.msra.mxu0 0.0
    %109 = vmatprep.subr.mxu0 0.0
    %110 = vmatpush1.msra.mxu0 0.0
    %111 = vmatprep.subr.mxu0 0.0
    %112 = vmatpush1.msra.mxu0 0.0
    %113 = vmatprep.subr.mxu0 0.0
    %114 = vmatpush1.msra.mxu0 0.0
    %115 = vmatprep.subr.mxu0 0.0
    %116 = vmatpush1.msra.mxu0 0.0
    %117 = vmatprep.subr.mxu0 0.0
    %118 = vmatpush1.msra.mxu0 0.0
    %119 = vmatprep.subr.mxu0 0.0
    %120 = vmatpush1.msra.mxu0 0.0
    %121 = vmatprep.subr.mxu0 0.0
    %122 = vmatpush1.msra.mxu0 0.0
    %123 = vmatprep.subr.mxu0 0.0
    %124 = vmatpush1.msra.mxu0 0.0
    %125 = vmatprep.subr.mxu0 0.0
    %126 = vmatpush1.msra.mxu0 0.0
    %127 = vmatprep.subr.mxu0 0.0
    %128 = vmatpush1.msra.mxu0 0.0
    %129 = vmatprep.subr.mxu0 0.0
    %130 = vmatpush1.msra.mxu0 0.0
    %131 = vmatprep.subr.mxu0 0.0
    %132 = vmatpush1.msra.mxu0 0.0
    %133 = vmatprep.subr.mxu0 0.0
    %134 = vmatpush1.msra.mxu0 0.0
    %135 = vmatprep.subr.mxu0 0.0
    %136 = vmatpush1.msra.mxu0 0.0
    %137 = vmatprep.subr.mxu0 0.0
    %138 = vmatpush1.msra.mxu0 0.0
    %139 = vmatprep.subr.mxu0 0.0
    %140 = vmatpush1.msra.mxu0 0.0
    %141 = vmatprep.subr.mxu0 0.0
    %142 = vmatpush1.msra.mxu0 0.0
    %143 = vmatprep.subr.mxu0 0.0
    %144 = vmatpush1.msra.mxu0 0.0
    %145 = vmatprep.subr.mxu0 0.0
    %146 = vmatpush1.msra.mxu0 0.0
    %147 = vmatprep.subr.mxu0 0.0
    %148 = vmatpush1.msra.mxu0 0.0
    %149 = vmatprep.subr.mxu0 0.0
    %150 = vmatpush1.msra.mxu0 0.0
    %151 = vmatprep.mubr.f32.mxu0 0.0
    %152 = vmatmul.mubr.f32.gmra.mrb[0].mxu0 %v40
    %v153 = vpop.f32.mrb[0].mxu0
    %v154 = vadd.f32 0.0, %v153
    %v155 = vpop.f32.mrb[0].mxu0
    %v156 = vadd.f32 0.0, %v155
    %157 = vmatprep.mubr.f32.mxu0 0.0
    %158 = vmatmul.mubr.f32.gmra.mrb[0].mxu0 %v43
    %v159 = vpop.f32.mrb[0].mxu0
    %v160 = vadd.f32 0.0, %v159
    %v161 = vpop.f32.mrb[0].mxu0
    %v162 = vadd.f32 0.0, %v161
    %163 = vmatprep.mubr.f32.mxu0 0.0
    %164 = vmatmul.mubr.f32.gmra.mrb[0].mxu0 %v46
    %v165 = vpop.f32.mrb[0].mxu0
    %v166 = vadd.f32 0.0, %v165
    %v167 = vpop.f32.mrb[0].mxu0
    %v168 = vadd.f32 0.0, %v167
    %169 = vmatprep.mubr.f32.mxu0 0.0
    %170 = vmatmul.mubr.f32.gmra.mrb[0].mxu0 %v49
    %v171 = vpop.f32.mrb[0].mxu0
    %v172 = vadd.f32 0.0, %v171
    %v173 = vpop.f32.mrb[0].mxu0
    %v174 = vadd.f32 0.0, %v173
    %175 = vmatprep.mubr.f32.mxu0 0.0
    %176 = vmatmul.mubr.f32.gmra.mrb[0].mxu0 %v52
    %v177 = vpop.f32.mrb[0].mxu0
    %v178 = vadd.f32 0.0, %v177
    %v179 = vpop.f32.mrb[0].mxu0
    %v180 = vadd.f32 0.0, %v179
    %181 = vmatprep.mubr.f32.mxu0 0.0
    %182 = vmatmul.mubr.f32.gmra.mrb[0].mxu0 %v55
    %v183 = vpop.f32.mrb[0].mxu0
    %v184 = vadd.f32 0.0, %v183
    %v185 = vpop.f32.mrb[0].mxu0
    %v186 = vadd.f32 0.0, %v185
    %187 = vmatprep.mubr.f32.mxu0 0.0
    %188 = vmatmul.mubr.f32.gmra.mrb[0].mxu0 %v58
    %v189 = vpop.f32.mrb[0].mxu0
    %v190 = vadd.f32 0.0, %v189
    %v191 = vpop.f32.mrb[0].mxu0
    %v192 = vadd.f32 0.0, %v191
    %193 = vmatprep.mubr.f32.mxu0 0.0
    %194 = vmatmul.mubr.f32.gmra.mrb[0].mxu0 %v61
    %v195 = vpop.f32.mrb[0].mxu0
    %v196 = vadd.f32 0.0, %v195
    %v197 = vpop.f32.mrb[0].mxu0
    %v198 = vadd.f32 0.0, %v197
    %199 = vmatprep.mubr.f32.mxu0 0.0
    %200 = vmatmul.mubr.f32.gmra.mrb[0].mxu0 %v64
    %v201 = vpop.f32.mrb[0].mxu0
    %v202 = vadd.f32 0.0, %v201
    %v203 = vpop.f32.mrb[0].mxu0
    %v204 = vadd.f32 0.0, %v203
    %205 = vmatprep.mubr.f32.mxu0 0.0
    %206 = vmatmul.mubr.f32.gmra.mrb[0].mxu0 %v67
    %v207 = vpop.f32.mrb[0].mxu0
    %v208 = vadd.f32 0.0, %v207
    %v209 = vpop.f32.mrb[0].mxu0
    %v210 = vadd.f32 0.0, %v209
    %211 = vmatprep.mubr.f32.mxu0 0.0
    %212 = vmatmul.mubr.f32.gmra.mrb[0].mxu0 %v70
    %v213 = vpop.f32.mrb[0].mxu0
    %v214 = vadd.f32 0.0, %v213
    %v215 = vpop.f32.mrb[0].mxu0
    %v216 = vadd.f32 0.0, %v215
    %217 = vmatprep.mubr.f32.mxu0 0.0
    %218 = vmatmul.mubr.f32.gmra.mrb[0].mxu0 %v73
    %v219 = vpop.f32.mrb[0].mxu0
    %v220 = vadd.f32 0.0, %v219
    %v221 = vpop.f32.mrb[0].mxu0
    %v222 = vadd.f32 0.0, %v221
    %223 = vmatprep.mubr.f32.mxu0 0.0
    %224 = vmatmul.mubr.f32.gmra.mrb[0].mxu0 %v76
    %v225 = vpop.f32.mrb[0].mxu0
    %v226 = vadd.f32 0.0, %v225
    %v227 = vpop.f32.mrb[0].mxu0
    %v228 = vadd.f32 0.0, %v227
    %229 = vmatprep.mubr.f32.mxu0 0.0
    %230 = vmatmul.mubr.f32.gmra.mrb[0].mxu0 %v79
    %v231 = vpop.f32.mrb[0].mxu0
    %v232 = vadd.f32 0.0, %v231
    %v233 = vpop.f32.mrb[0].mxu0
    %v234 = vadd.f32 0.0, %v233
    %235 = vmatprep.mubr.f32.mxu0 0.0
    %236 = vmatmul.mubr.f32.gmra.mrb[0].mxu0 %v82
    %v237 = vpop.f32.mrb[0].mxu0
    %v238 = vadd.f32 0.0, %v237
    %v239 = vpop.f32.mrb[0].mxu0
    %v240 = vadd.f32 0.0, %v239
    %241 = vmatprep.mubr.f32.mxu0 0.0
    %242 = vmatmul.mubr.f32.gmra.mrb[0].mxu0 %v85
    %v243 = vpop.f32.mrb[0].mxu0
    %v244 = vadd.f32 0.0, %v243
    %v245 = vpop.f32.mrb[0].mxu0
    %v246 = vadd.f32 0.0, %v245
    %247 = vdwg.mxu0
    %v248 = vpack.c.bf16 %v160, %v154
    %v249 = vpack.c.bf16 %v172, %v166
    %v250 = vpack.c.bf16 %v184, %v178
    %v251 = vpack.c.bf16 %v196, %v190
    %v252 = vpack.c.bf16 %v208, %v202
    %v253 = vpack.c.bf16 %v220, %v214
    %v254 = vpack.c.bf16 %v232, %v226
    %v255 = vpack.c.bf16 %v244, %v238
    %v264 = vunpack.c.l.b16 %v248
    %v265 = vunpack.c.h.b16 %v248
    %v266 = vunpack.c.l.b16 %v249
    %v267 = vunpack.c.h.b16 %v249
    %v268 = vunpack.c.l.b16 %v250
    %v269 = vunpack.c.h.b16 %v250
    %v270 = vunpack.c.l.b16 %v251
    %v271 = vunpack.c.h.b16 %v251
    %v272 = vunpack.c.l.b16 %v252
    %v273 = vunpack.c.h.b16 %v252
    %v274 = vunpack.c.l.b16 %v253
    %v275 = vunpack.c.h.b16 %v253
    %v276 = vunpack.c.l.b16 %v254
    %v277 = vunpack.c.h.b16 %v254
    %v278 = vunpack.c.l.b16 %v255
    %v279 = vunpack.c.h.b16 %v255
    %v280 = vpack.c.b16 %v264, %v264
    %v281 = vpack.c.b16 %v265, %v265
    %v282 = vpack.c.b16 %v266, %v266
    %v283 = vpack.c.b16 %v267, %v267
    %v284 = vpack.c.b16 %v268, %v268
    %v285 = vpack.c.b16 %v269, %v269
    %v286 = vpack.c.b16 %v270, %v270
    %v287 = vpack.c.b16 %v271, %v271
    %v288 = vpack.c.b16 %v272, %v272
    %v289 = vpack.c.b16 %v273, %v273
    %v290 = vpack.c.b16 %v274, %v274
    %v291 = vpack.c.b16 %v275, %v275
    %v292 = vpack.c.b16 %v276, %v276
    %v293 = vpack.c.b16 %v277, %v277
    %v294 = vpack.c.b16 %v278, %v278
    %v295 = vpack.c.b16 %v279, %v279
    %312 = vst [vmem:[#allocation2] sm:$0xf] %v280
    %313 = vst [vmem:[#allocation2 + $0x4] sm:$0xf] %v281
    %314 = vst [vmem:[#allocation2 + $0x8] sm:$0xf] %v282
    %315 = vst [vmem:[#allocation2 + $0xc] sm:$0xf] %v283
    %316 = vst [vmem:[#allocation2 + $0x10] sm:$0xf] %v284
    %317 = vst [vmem:[#allocation2 + $0x14] sm:$0xf] %v285
    %318 = vst [vmem:[#allocation2 + $0x18] sm:$0xf] %v286
    %319 = vst [vmem:[#allocation2 + $0x1c] sm:$0xf] %v287
    %320 = vst [vmem:[#allocation2 + $0x20] sm:$0xf] %v288
    %321 = vst [vmem:[#allocation2 + $0x24] sm:$0xf] %v289
    %322 = vst [vmem:[#allocation2 + $0x28] sm:$0xf] %v290
    %323 = vst [vmem:[#allocation2 + $0x2c] sm:$0xf] %v291
    %324 = vst [vmem:[#allocation2 + $0x30] sm:$0xf] %v292
    %325 = vst [vmem:[#allocation2 + $0x34] sm:$0xf] %v293
    %326 = vst [vmem:[#allocation2 + $0x38] sm:$0xf] %v294
    %327 = vst [vmem:[#allocation2 + $0x3c] sm:$0xf] %v295
    %v328 = vld [vmem:[%s2] sm:$0x1]
    %v330 = vlaneseq
    %v331 = vshrl.u32 %v330, 7
    %v332 = vsub.s32 0, %v331
    %v333 = vrot.slane %v328, %v332
    %v335 = vadd.f32 %v156, %v333
    %v336 = vadd.f32 %v162, %v333
    %v337 = vadd.f32 %v168, %v333
    %v338 = vadd.f32 %v174, %v333
    %v339 = vadd.f32 %v180, %v333
    %v340 = vadd.f32 %v186, %v333
    %v341 = vadd.f32 %v192, %v333
    %v342 = vadd.f32 %v198, %v333
    %v343 = vadd.f32 %v204, %v333
    %v344 = vadd.f32 %v210, %v333
    %v345 = vadd.f32 %v216, %v333
    %v346 = vadd.f32 %v222, %v333
    %v347 = vadd.f32 %v228, %v333
    %v348 = vadd.f32 %v234, %v333
    %v349 = vadd.f32 %v240, %v333
    %v350 = vadd.f32 %v246, %v333
    %351 = vst [vmem:[#allocation4] sm:$0xff] %v335
    %352 = vst [vmem:[#allocation4 + $0x8] sm:$0xff] %v336
    %353 = vst [vmem:[#allocation4 + $0x10] sm:$0xff] %v337
    %354 = vst [vmem:[#allocation4 + $0x18] sm:$0xff] %v338
    %355 = vst [vmem:[#allocation4 + $0x20] sm:$0xff] %v339
    %356 = vst [vmem:[#allocation4 + $0x28] sm:$0xff] %v340
    %357 = vst [vmem:[#allocation4 + $0x30] sm:$0xff] %v341
    %358 = vst [vmem:[#allocation4 + $0x38] sm:$0xff] %v342
    %359 = vst [vmem:[#allocation4 + $0x40] sm:$0xff] %v343
    %360 = vst [vmem:[#allocation4 + $0x48] sm:$0xff] %v344
    %361 = vst [vmem:[#allocation4 + $0x50] sm:$0xff] %v345
    %362 = vst [vmem:[#allocation4 + $0x58] sm:$0xff] %v346
    %363 = vst [vmem:[#allocation4 + $0x60] sm:$0xff] %v347
    %364 = vst [vmem:[#allocation4 + $0x68] sm:$0xff] %v348
    %365 = vst [vmem:[#allocation4 + $0x70] sm:$0xff] %v349
    %366 = vst [vmem:[#allocation4 + $0x78] sm:$0xff] %v350
    // Predicated region
    $region14: #{tpu_custom_call.1} parent=1 // pred_check
      _
    $region15: #{tpu_custom_call.1} parent=1 // pred_check_branch
      %368 = sbr.rel (0) target = $region17
    $region16: #{tpu_custom_call.1} parent=1 // pred_region
      %s370 = ssub.s32 1024, 1024
      %371 = vsyncadd [#allocation3], %s370
      %s372 = sshll.u32 [#allocation2], 4
      %s373 = int_to_ptr.vmem [resolvable:$true] %s372
      %378 = dma.vmem_to_hbm [thread:$0]  %s373, 1024, %s3, [#allocation3], 64, 64, 4
    $region17: #{tpu_custom_call.1} parent=1 // pred_fallthru
      _
    // Predicated region
    $region18: #{tpu_custom_call.1} parent=1 // pred_check
      _
    $region19: #{tpu_custom_call.1} parent=1 // pred_check_branch
      %380 = sbr.rel (0) target = $region21
    $region20: #{tpu_custom_call.1} parent=1 // pred_region
      %s382 = ssub.s32 2048, 2048
      %383 = vsyncadd [#allocation5], %s382
      %s384 = sshll.u32 [#allocation4], 4
      %s385 = int_to_ptr.vmem [resolvable:$true] %s384
      %390 = dma.vmem_to_hbm [thread:$0]  %s385, 2048, %s4, [#allocation5], 128, 128, 8
    $region21: #{tpu_custom_call.1} parent=1 // pred_fallthru
      _
    // Predicated region
    $region22: #{tpu_custom_call.1} parent=1 // pred_check
      _
    $region23: #{tpu_custom_call.1} parent=1 // pred_check_branch
      %392 = sbr.rel (0) target = $region25
    $region24: #{tpu_custom_call.1} parent=1 // pred_region
      %393 = dma.done [#allocation3], 1024
    $region25: #{tpu_custom_call.1} parent=1 // pred_fallthru
      _
    // Predicated region
    $region26: #{tpu_custom_call.1} parent=1 // pred_check
      _
    $region27: #{tpu_custom_call.1} parent=1 // pred_check_branch
      %395 = sbr.rel (0) target = $region29
    $region28: #{tpu_custom_call.1} parent=1 // pred_region
      %396 = dma.done [#allocation5], 2048
    $region29: #{tpu_custom_call.1} parent=1 // pred_fallthru
      _
    %397 = vsyncpa [#allocation3], 1
    %398 = vsyncpa [#allocation5], 1

</llo_original>
